<compile_context>
chip_gen: v6e
topology: v6e:2x2x1
jax: 0.10.0
libtpu: 0.0.40
codegen_flags: <defaults>
</compile_context>

<pallas_src>
import functools

import jax
import jax.numpy as jnp
from jax import lax
from jax.experimental import pallas as pl
from jax.experimental.pallas import tpu as pltpu


# --------------------------------------------------------------------------- #
# Kernels
# --------------------------------------------------------------------------- #
def _ce_single_pass_kernel(labels_ref, logits_ref, nll_ref):
    """Full class dim in one block: per-row NLL via a stable logsumexp.

    labels_ref: (tile_n, 1) int32
    logits_ref: (tile_n, C) logits (any float dtype; upcast to f32)
    nll_ref:    (tile_n, 1) f32 per-row negative log-likelihood
    """
    x = logits_ref[...].astype(jnp.float32)                 # (tile_n, C)
    lab = labels_ref[...]                                    # (tile_n, 1)

    m = jnp.max(x, axis=-1, keepdims=True)                   # (tile_n, 1)
    xm = x - m
    sumexp = jnp.sum(jnp.exp(xm), axis=-1, keepdims=True)

    # Gather the (shifted) logit at the label index via a one-hot compare.
    col = lax.broadcasted_iota(jnp.int32, x.shape, 1)
    picked_rel = jnp.sum(jnp.where(col == lab, xm, 0.0), axis=-1, keepdims=True)

    nll_ref[...] = jnp.log(sumexp) - picked_rel
    # Rows past the true batch size (partial last row tile) are discarded by
    # Pallas on writeback, so no explicit row masking is needed.


def _ce_class_tiled_kernel(labels_ref, logits_ref, nll_ref,
                           m_ref, l_ref, p_ref, *, tile_c, c_total):
    """Class-tiled path (very wide C): online logsumexp across class tiles.

    Grid = (row_tiles [parallel], class_tiles [arbitrary]).
    m_ref/l_ref/p_ref: (tile_n, 1) f32 scratch carrying running max,
    running sum-exp and the picked (label) logit across class tiles.
    """
    j = pl.program_id(1)

    @pl.when(j == 0)
    def _init():
        m_ref[...] = jnp.full_like(m_ref, -jnp.inf)
        l_ref[...] = jnp.zeros_like(l_ref)
        p_ref[...] = jnp.zeros_like(p_ref)

    x = logits_ref[...].astype(jnp.float32)                  # (tile_n, tile_c)
    lab = labels_ref[...]                                     # (tile_n, 1)

    col = j * tile_c + lax.broadcasted_iota(jnp.int32, x.shape, 1)
    # Mask class columns past C (partial last class tile reads are undefined).
    x = jnp.where(col < c_total, x, -jnp.inf)

    m_prev = m_ref[...]
    m_new = jnp.maximum(m_prev, jnp.max(x, axis=-1, keepdims=True))
    l_ref[...] = (l_ref[...] * jnp.exp(m_prev - m_new)
                  + jnp.sum(jnp.exp(x - m_new), axis=-1, keepdims=True))
    m_ref[...] = m_new
    # The label column is always < C, so it never hits a masked (-inf) column.
    p_ref[...] += jnp.sum(jnp.where(col == lab, x, 0.0), axis=-1, keepdims=True)

    @pl.when(j == pl.num_programs(1) - 1)
    def _finalize():
        nll_ref[...] = m_ref[...] + jnp.log(l_ref[...]) - p_ref[...]


# --------------------------------------------------------------------------- #
# Tile sizing helpers
# --------------------------------------------------------------------------- #
def _vmem_capacity_bytes(default=64 << 20):
    """Physical VMEM per core; conservative 64 MiB (v7x) fallback."""
    try:
        info = pltpu.get_tpu_info()
        for name in ("vmem_capacity_bytes", "vmem_size_bytes", "vmem_bytes"):
            v = getattr(info, name, None)
            if v:
                return int(v)
    except Exception:
        pass
    return default


def _clamp_tile_n(t, n, row_align):
    if n <= row_align:
        return int(n)                      # block == full first dim
    t = min(int(t), (n // row_align) * row_align)
    t = max(row_align, (t // row_align) * row_align)
    return int(t)


def _choose_tiles(n, c, itemsize, work_budget, row_align):
    """Pick (tile_n, tile_c) so the double-buffered input + f32 temps fit."""
    per_elem = 2 * itemsize + 8            # 2x DMA buffers + ~2 f32 working copies
    per_row_fixed = 4096                   # lane-padded labels/nll blocks + scratch
    avail = max(work_budget - (2 << 20), 1 << 20)

    # Preferred: single pass over the full class dim (no scratch, no online LSE).
    rows_fit = avail // (c * per_elem + per_row_fixed)
    if rows_fit >= 2 * row_align:
        tile_n = _clamp_tile_n(min(rows_fit, 8192), n, row_align)
        return tile_n, int(c)

    # Very wide class dim: tile classes too, online logsumexp.
    tile_n = _clamp_tile_n(256, n, row_align)
    cols_fit = (avail - tile_n * per_row_fixed) // max(1, tile_n * per_elem)
    tile_c = max(128, (cols_fit // 128) * 128)
    tile_c = min(tile_c, int(c))
    return tile_n, int(tile_c)


# --------------------------------------------------------------------------- #
# Wrapper (ERMLoss.forward equivalent)
# --------------------------------------------------------------------------- #
def erm_loss(labels, logits, params=None, N=1, *, tile_n=None, tile_c=None):
    """Returns {'loss': nll, 'nll': nll}; params / N are accepted and ignored."""
    del params, N  # unused, as in the reference module
    n, c = logits.shape
    labels2d = labels.astype(jnp.int32).reshape(n, 1)
    itemsize = jnp.dtype(logits.dtype).itemsize
    row_align = max(8, 32 // max(1, itemsize))   # 8 (f32) / 16 (bf16) / 32 (int8)

    # Generation-aware VMEM budget (v7x 64 MiB -> ~48 MiB limit; v5e/v6e 128 MiB
    # -> 96 MiB limit), with the tile working set derived *from* that limit.
    phys_vmem = _vmem_capacity_bytes()
    vmem_limit = int(max(32 << 20, min(phys_vmem * 3 // 4, 96 << 20)))
    work_budget = vmem_limit * 4 // 5

    auto_tn, auto_tc = _choose_tiles(n, c, itemsize, work_budget, row_align)
    tile_n = auto_tn if tile_n is None else _clamp_tile_n(tile_n, n, row_align)
    tile_c = auto_tc if tile_c is None else int(tile_c)
    if tile_c < c:
        tile_c = min(max(128, (tile_c // 128) * 128), c)

    num_row_tiles = pl.cdiv(n, tile_n)

    cost = pl.CostEstimate(
        flops=6 * n * c,
        transcendentals=n * c,
        bytes_accessed=n * c * itemsize + n * 4 + n * 4,
    )

    if tile_c >= c:
        kernel = _ce_single_pass_kernel
        grid = (num_row_tiles,)
        in_specs = [
            pl.BlockSpec((tile_n, 1), lambda i: (i, 0)),
            pl.BlockSpec((tile_n, c), lambda i: (i, 0)),
        ]
        out_specs = pl.BlockSpec((tile_n, 1), lambda i: (i, 0))
        scratch_shapes = []
        dim_sem = ("parallel",)
    else:
        num_class_tiles = pl.cdiv(c, tile_c)
        kernel = functools.partial(_ce_class_tiled_kernel,
                                   tile_c=tile_c, c_total=c)
        grid = (num_row_tiles, num_class_tiles)
        in_specs = [
            pl.BlockSpec((tile_n, 1), lambda i, j: (i, 0)),
            pl.BlockSpec((tile_n, tile_c), lambda i, j: (i, j)),
        ]
        out_specs = pl.BlockSpec((tile_n, 1), lambda i, j: (i, 0))
        scratch_shapes = [pltpu.VMEM((tile_n, 1), jnp.float32)] * 3
        dim_sem = ("parallel", "arbitrary")

    nll_rows = pl.pallas_call(
        kernel,
        out_shape=jax.ShapeDtypeStruct((n, 1), jnp.float32),
        grid=grid,
        in_specs=in_specs,
        out_specs=out_specs,
        scratch_shapes=scratch_shapes,
        compiler_params=pltpu.CompilerParams(
            dimension_semantics=dim_sem,
            vmem_limit_bytes=vmem_limit,
        ),
        cost_estimate=cost,
    )(labels2d, logits)

    nll = jnp.sum(nll_rows) * (1.0 / float(n))   # 'mean' reduction (tree-reduced)
    return {'loss': nll, 'nll': nll}


# --------------------------------------------------------------------------- #
# Self-test
# --------------------------------------------------------------------------- #
if __name__ == "__main__":
    key = jax.random.PRNGKey(0)
    k1, k2, k3, k4, k5, k6 = jax.random.split(key, 6)

    # --- test 1: f32 logits, auto tiling, partial last row tile -------------
    N1, C1 = 30, 40
    logits1 = jax.random.normal(k1, (N1, C1), dtype=jnp.float32)
    labels1 = jax.random.randint(k2, (N1,), 0, C1, dtype=jnp.int32)

    out1 = erm_loss(labels1, logits1, params=None, N=1)
    jax.block_until_ready(out1['loss'])

    logp1 = jax.nn.log_softmax(logits1, axis=-1)
    ref1 = -jnp.mean(logp1[jnp.arange(N1), labels1])
    assert jnp.allclose(out1['loss'], ref1, atol=1e-5), (out1['loss'], ref1)
    assert jnp.allclose(out1['nll'], ref1, atol=1e-5)

    # --- test 2: bf16 logits, auto tiling (16-row sublane alignment) --------
    N2, C2 = 200, 130
    logits2 = jax.random.normal(k3, (N2, C2), jnp.float32).astype(jnp.bfloat16)
    labels2 = jax.random.randint(k4, (N2,), 0, C2, dtype=jnp.int32)

    out2 = erm_loss(labels2, logits2)
    jax.block_until_ready(out2['loss'])

    logp2 = jax.nn.log_softmax(logits2.astype(jnp.float32), axis=-1)
    ref2 = -jnp.mean(logp2[jnp.arange(N2), labels2])
    assert jnp.allclose(out2['loss'], ref2, atol=1e-4), (out2['loss'], ref2)

    # --- test 3: forced class-dim tiling (online LSE, partial class tile) ---
    N3, C3 = 64, 300
    logits3 = jax.random.normal(k5, (N3, C3), dtype=jnp.float32)
    labels3 = jax.random.randint(k6, (N3,), 0, C3, dtype=jnp.int32)

    out3 = erm_loss(labels3, logits3, tile_n=32, tile_c=128)
    jax.block_until_ready(out3['loss'])

    logp3 = jax.nn.log_softmax(logits3, axis=-1)
    ref3 = -jnp.mean(logp3[jnp.arange(N3), labels3])
    assert jnp.allclose(out3['loss'], ref3, atol=1e-5), (out3['loss'], ref3)

    print("KERNEL_OK")
</pallas_src>

<mosaic_0001>
module attributes {stable_mosaic.version = 11 : i64} {
  func.func @_ce_single_pass_kernel(%arg0: i32, %arg1: memref<24x1xi32, #tpu.memory_space<vmem>>, %arg2: memref<24x40xf32, #tpu.memory_space<vmem>>, %arg3: memref<24x1xf32, #tpu.memory_space<vmem>>) attributes {dimension_semantics = [#tpu.dimension_semantics<parallel>], iteration_bounds = array<i64: 2>, scalar_prefetch = 0 : i64, scratch_operands = 0 : i64, tpu.core_type = #tpu.core_type<tc>, window_params = [{transform_indices = @transform_0, window_bounds = array<i64: 24, 1>}, {transform_indices = @transform_1, window_bounds = array<i64: 24, 40>}, {transform_indices = @transform_2, window_bounds = array<i64: 24, 1>}]} {
    %c0 = arith.constant 0 : index
    %c0_0 = arith.constant 0 : index
    %0 = vector.load %arg2[%c0, %c0_0] : memref<24x40xf32, #tpu.memory_space<vmem>>, vector<24x40xf32>
    %c0_1 = arith.constant 0 : index
    %c0_2 = arith.constant 0 : index
    %1 = vector.load %arg1[%c0_1, %c0_2] : memref<24x1xi32, #tpu.memory_space<vmem>>, vector<24x1xi32>
    %cst = arith.constant dense<0xFF800000> : vector<24xf32>
    %2 = vector.multi_reduction <maximumf>, %0, %cst [1] : vector<24x40xf32> to vector<24xf32>
    %3 = vector.shape_cast %2 : vector<24xf32> to vector<24x1xf32>
    %4 = vector.broadcast %3 : vector<24x1xf32> to vector<24x40xf32>
    %5 = arith.subf %0, %4 : vector<24x40xf32>
    %6 = math.exp %5 : vector<24x40xf32>
    %cst_3 = arith.constant dense<0.000000e+00> : vector<24xf32>
    %7 = vector.multi_reduction <add>, %6, %cst_3 [1] : vector<24x40xf32> to vector<24xf32>
    %8 = vector.shape_cast %7 : vector<24xf32> to vector<24x1xf32>
    %9 = tpu.iota {dimensions = array<i32: 1>} : vector<24x40xi32>
    %10 = vector.broadcast %1 : vector<24x1xi32> to vector<24x40xi32>
    %11 = arith.cmpi eq, %9, %10 : vector<24x40xi32>
    %cst_4 = arith.constant 0.000000e+00 : f32
    %12 = vector.broadcast %cst_4 : f32 to vector<24x40xf32>
    %13 = arith.select %11, %5, %12 : vector<24x40xi1>, vector<24x40xf32>
    %cst_5 = arith.constant dense<0.000000e+00> : vector<24xf32>
    %14 = vector.multi_reduction <add>, %13, %cst_5 [1] : vector<24x40xf32> to vector<24xf32>
    %15 = vector.shape_cast %14 : vector<24xf32> to vector<24x1xf32>
    %16 = math.log %8 : vector<24x1xf32>
    %17 = arith.subf %16, %15 : vector<24x1xf32>
    %c0_6 = arith.constant 0 : index
    %c0_7 = arith.constant 0 : index
    %18 = vector.load %arg3[%c0_6, %c0_7] : memref<24x1xf32, #tpu.memory_space<vmem>>, vector<24x1xf32>
    tpu.vector_store %arg3[%c0_6, %c0_7], %17 {strides = array<i32>} : memref<24x1xf32, #tpu.memory_space<vmem>>, vector<24x1xf32>,
    return
  }
  func.func @transform_0(%arg0: i32) -> (i32, i32) {
    %c0_i32 = arith.constant 0 : i32
    %c0_i32_0 = arith.constant 0 : i32
    return %arg0, %c0_i32 : i32, i32
  }
  func.func @transform_1(%arg0: i32) -> (i32, i32) {
    %c0_i32 = arith.constant 0 : i32
    %c0_i32_0 = arith.constant 0 : i32
    return %arg0, %c0_i32 : i32, i32
  }
  func.func @transform_2(%arg0: i32) -> (i32, i32) {
    %c0_i32 = arith.constant 0 : i32
    %c0_i32_0 = arith.constant 0 : i32
    return %arg0, %c0_i32 : i32, i32
  }
}

</mosaic_0001>

<llo_original>
// kernel: tpu_custom_call.1
$region0: #{tpu_custom_call.1}
  #allocation0 [shape = 'u32[]', space=smem, size = 0x4, offset = 0x4, fixed_abs, tag = 'smem constant byte address 0x4 - core index']
  #allocation1 [shape = 'u32[144,128]{1,0:T(1,128)}', space=vmem, size = 0x12000, scoped, tag = 'internal scratch']
  %s0 = inlined_call_operand.vmem [shape: s32[30,1], index: 0, kind: input, shape index: {}]
  %s1 = inlined_call_operand.vmem [shape: f32[30,40], index: 1, kind: input, shape index: {}]
  %s2 = inlined_call_operand.vmem [shape: f32[30,1], index: 2, kind: output, shape index: {}]
  %s3 = sld [smem:[#allocation0]]
  $region89: #{tpu_custom_call.1} parent=0
    _
  %s5 = ssub.s32 1, %s3
  %s6 = scalar_select 0, %s5, %s3
  $region1: #{tpu_custom_call.1} parent=0
    #allocation2 [shape = 'u8[24576]{0}', space=vmem, size = 0x6000, scoped, tag = 'output window, operand 0']
    loop: start=0, step=1, limit=4
    $region2: #{tpu_custom_call.1} parent=1 // loop_pre_header
      _
    $region3: #{tpu_custom_call.1} parent=1 // loop_header
      %s8 = sphi 0, %s12
      %p9 = scmp.ge.s32.totalorder %s8, 4
      %s18 = sphi 0, %s20
      %s21 = sphi 0, %s18
      %s22 = sphi 0, %s21
      %s38 = sphi 0, %s22
      %s44 = sphi 0, %s46
      %s47 = sphi 0, %s44
      %s48 = sphi 0, %s47
      %s64 = sphi 0, %s48
      %s70 = sphi 0, %s72
      %s73 = sphi 0, %s70
      %s74 = sphi 0, %s73
      %s90 = sphi 0, %s74
    $region4: #{tpu_custom_call.1} parent=1 // loop_header_branch
      %11 = sbr.rel (%p9) target = $region8
    $region5: #{tpu_custom_call.1} parent=1 // loop_body
      %s13 = ssub.s32 %s8, 1
      %s14 = ssub.s32 %s8, 2
      %s15 = sadd.s32 %s8, 1
      %s16 = ssub.s32 %s8, %s15
      %p17 = scmp.eq.s32.totalorder %s16, 0
      %s19 = sadd.s32 %s18, 1
      %s20 = scalar_select %p17, %s18, %s19
      %p23 = pneg %p17
      %p24 = scmp.eq.s32.totalorder %s8, 1
      %p25 = por %p23, %p24
      %p26 = scmp.ne.s32.totalorder %s18, %s21
      %p27 = scmp.eq.s32.totalorder %s8, 0
      %p28 = por %p26, %p27
      %p29 = scmp.ne.s32.totalorder %s18, %s21
      %p30 = scmp.eq.s32.totalorder %s13, 1
      %p31 = por %p29, %p30
      %p32 = scmp.ne.s32.totalorder %s21, %s22
      %p33 = scmp.eq.s32.totalorder %s13, 0
      %p34 = por %p32, %p33
      %p35 = scmp.ne.s32.totalorder %s21, %s22
      %p36 = scmp.eq.s32.totalorder %s14, 1
      %p37 = por %p35, %p36
      %p39 = scmp.ne.s32.totalorder %s22, %s38
      %p40 = scmp.eq.s32.totalorder %s14, 0
      %p41 = por %p39, %p40
      %s42 = ssub.s32 %s8, %s15
      %p43 = scmp.eq.s32.totalorder %s42, 0
      %s45 = sadd.s32 %s44, 1
      %s46 = scalar_select %p43, %s44, %s45
      %p49 = pneg %p43
      %p50 = scmp.eq.s32.totalorder %s8, 1
      %p51 = por %p49, %p50
      %p52 = scmp.ne.s32.totalorder %s44, %s47
      %p53 = scmp.eq.s32.totalorder %s8, 0
      %p54 = por %p52, %p53
      %p55 = scmp.ne.s32.totalorder %s44, %s47
      %p56 = scmp.eq.s32.totalorder %s13, 1
      %p57 = por %p55, %p56
      %p58 = scmp.ne.s32.totalorder %s47, %s48
      %p59 = scmp.eq.s32.totalorder %s13, 0
      %p60 = por %p58, %p59
      %p61 = scmp.ne.s32.totalorder %s47, %s48
      %p62 = scmp.eq.s32.totalorder %s14, 1
      %p63 = por %p61, %p62
      %p65 = scmp.ne.s32.totalorder %s48, %s64
      %p66 = scmp.eq.s32.totalorder %s14, 0
      %p67 = por %p65, %p66
      %s68 = ssub.s32 %s8, %s15
      %p69 = scmp.eq.s32.totalorder %s68, 0
      %s71 = sadd.s32 %s70, 1
      %s72 = scalar_select %p69, %s70, %s71
      %p75 = pneg %p69
      %p76 = scmp.eq.s32.totalorder %s8, 1
      %p77 = por %p75, %p76
      %p78 = scmp.ne.s32.totalorder %s70, %s73
      %p79 = scmp.eq.s32.totalorder %s8, 0
      %p80 = por %p78, %p79
      %p81 = scmp.ne.s32.totalorder %s70, %s73
      %p82 = scmp.eq.s32.totalorder %s13, 1
      %p83 = por %p81, %p82
      %p84 = scmp.ne.s32.totalorder %s73, %s74
      %p85 = scmp.eq.s32.totalorder %s13, 0
      %p86 = por %p84, %p85
      %p87 = scmp.ne.s32.totalorder %s73, %s74
      %p88 = scmp.eq.s32.totalorder %s14, 1
      %p89 = por %p87, %p88
      %p91 = scmp.ne.s32.totalorder %s74, %s90
      %p92 = scmp.eq.s32.totalorder %s14, 0
      %p93 = por %p91, %p92
      %p94 = scmp.le.s32.totalorder 1, %s8
      %p95 = scmp.lt.s32.totalorder %s8, 3
      %p96 = pnand %p94, %p95
      %p97 = pneg %p96
      // Predicated region
      $region9: #{tpu_custom_call.1} parent=5 // pred_check
        _
      $region10: #{tpu_custom_call.1} parent=5 // pred_check_branch
        %99 = sbr.rel (%p96) target = $region12
      $region11: #{tpu_custom_call.1} parent=5 // pred_region
        %s100 = ssub.s32 %s8, 1
      $region12: #{tpu_custom_call.1} parent=5 // pred_fallthru
        _
      %p101 = scmp.lt.s32.totalorder %s8, 2
      // Predicated region
      $region13: #{tpu_custom_call.1} parent=5 // pred_check
        %p102 = pneg %p101
      $region14: #{tpu_custom_call.1} parent=5 // pred_check_branch
        %104 = sbr.rel (%p102) target = $region16
      $region15: #{tpu_custom_call.1} parent=5 // pred_region
        // Predicated region
        $region17: #{tpu_custom_call.1} parent=15 // pred_check
          %p105 = pneg %p28
        $region18: #{tpu_custom_call.1} parent=15 // pred_check_branch
          %107 = sbr.rel (%p105) target = $region20
        $region19: #{tpu_custom_call.1} parent=15 // pred_region
          %s108 = smul.u32 3, %s8
          %s109 = ssub.s32 4, %s108
          %p110 = scmp.lt.s32.totalorder %s109, 3
          %s111 = scalar_select %p110, %s109, 3
          %s112 = smul.u32 128, %s111
          %p113 = scmp.lt.s32.totalorder %s108, 3
          %s114 = scalar_select %p113, %s108, 3
          %s115 = smul.addr %s114, 8
          %s116 = scalar_lea.vmem %s0, %s115
          %s117 = smul.u32 3, %s8
          %s118 = ssub.s32 4, %s117
          %p119 = scmp.lt.s32.totalorder %s118, 3
          %s120 = scalar_select %p119, %s118, 3
          %s121 = smul.u32 128, %s120
        $region20: #{tpu_custom_call.1} parent=15 // pred_fallthru
          _
        // Predicated region
        $region21: #{tpu_custom_call.1} parent=15 // pred_check
          %p122 = pneg %p54
        $region22: #{tpu_custom_call.1} parent=15 // pred_check_branch
          %124 = sbr.rel (%p122) target = $region24
        $region23: #{tpu_custom_call.1} parent=15 // pred_region
          %s125 = smul.u32 3, %s8
          %s126 = ssub.s32 4, %s125
          %p127 = scmp.lt.s32.totalorder %s126, 3
          %s128 = scalar_select %p127, %s126, 3
          %s129 = smul.u32 128, %s128
          %p130 = scmp.lt.s32.totalorder %s125, 3
          %s131 = scalar_select %p130, %s125, 3
          %s132 = smul.addr %s131, 8
          %s133 = scalar_lea.vmem %s1, %s132
          %s134 = smul.u32 3, %s8
          %s135 = ssub.s32 4, %s134
          %p136 = scmp.lt.s32.totalorder %s135, 3
          %s137 = scalar_select %p136, %s135, 3
          %s138 = smul.u32 128, %s137
        $region24: #{tpu_custom_call.1} parent=15 // pred_fallthru
          _
      $region16: #{tpu_custom_call.1} parent=5 // pred_fallthru
        _
      %p139 = scmp.le.s32.totalorder 1, %s8
      %p140 = scmp.lt.s32.totalorder %s8, 3
      %p141 = pnand %p139, %p140
      %p142 = pneg %p141
      // Predicated region
      $region25: #{tpu_custom_call.1} parent=5 // pred_check
        _
      $region26: #{tpu_custom_call.1} parent=5 // pred_check_branch
        %144 = sbr.rel (%p141) target = $region28
      $region27: #{tpu_custom_call.1} parent=5 // pred_region
        %s145 = ssub.s32 %s8, 1
        %s146 = smul.u32 3, %s13
        %s147 = ssub.s32 4, %s146
        %p148 = scmp.lt.s32.totalorder %s147, 3
        %s149 = scalar_select %p148, %s147, 3
        %s150 = smul.u32 128, %s149
        %p151 = scmp.lt.s32.totalorder %s146, 3
        %s152 = scalar_select %p151, %s146, 3
        %s153 = smul.addr %s152, 8
        %s154 = scalar_lea.vmem %s0, %s153
        %p155 = pneg %p34
        %p156 = pneg %p31
        %s157 = smul.u32 3, %s13
        %s158 = ssub.s32 4, %s157
        %p159 = scmp.lt.s32.totalorder %s158, 3
        %s160 = scalar_select %p159, %s158, 3
        %s161 = smul.u32 128, %s160
        %p162 = scmp.lt.s32.totalorder %s157, 3
        %s163 = scalar_select %p162, %s157, 3
        %s164 = smul.addr %s163, 8
        %s165 = scalar_lea.vmem %s1, %s164
        %p166 = pneg %p60
        %p167 = pneg %p57
        %p168 = pneg %p86
        %p169 = pneg %p83
        %s170 = sand.u32 %s73, 1
        %s171 = sand.u32 %s73, 1
        %s172 = smul.addr %s171, 24
        %s173 = scalar_lea.vmem [#allocation2], %s172
        %s174 = smul.u32 3, %s13
        %s175 = ssub.s32 4, %s174
        %p176 = scmp.lt.s32.totalorder %s175, 3
        %s177 = scalar_select %p176, %s175, 3
        %s178 = smul.u32 128, %s177
        %p179 = scmp.lt.s32.totalorder %s174, 3
        %s180 = scalar_select %p179, %s174, 3
        %s181 = smul.addr %s180, 8
        %s182 = scalar_lea.vmem %s0, %s181
        %s183 = smul.u32 3, %s13
        %s184 = ssub.s32 4, %s183
        %p185 = scmp.lt.s32.totalorder %s184, 3
        %s186 = scalar_select %p185, %s184, 3
        %s187 = smul.u32 128, %s186
        %s188 = smul.u32 3, %s13
        %s189 = ssub.s32 4, %s188
        %p190 = scmp.lt.s32.totalorder %s189, 3
        %s191 = scalar_select %p190, %s189, 3
        %s192 = smul.u32 128, %s191
        %p193 = scmp.lt.s32.totalorder %s188, 3
        %s194 = scalar_select %p193, %s188, 3
        %s195 = smul.addr %s194, 8
        %s196 = scalar_lea.vmem %s1, %s195
        %s197 = smul.u32 3, %s13
        %s198 = ssub.s32 4, %s197
        %p199 = scmp.lt.s32.totalorder %s198, 3
        %s200 = scalar_select %p199, %s198, 3
        %s201 = smul.u32 128, %s200
        %s202 = smul.u32 3, %s13
        %s203 = ssub.s32 4, %s202
        %p204 = scmp.lt.s32.totalorder %s203, 3
        %s205 = scalar_select %p204, %s203, 3
        %s206 = smul.u32 128, %s205
        %v207 = vld [vmem:[%s196] sm:$0xff]
        %v208 = vld [vmem:[%s196 + $0x8] sm:$0xff]
        %v209 = vld [vmem:[%s196 + $0x10] sm:$0xff]
        %v210 = vld [vmem:[%s182] sm:$0xff]
        %v211 = vld [vmem:[%s182 + $0x8] sm:$0xff]
        %v212 = vld [vmem:[%s182 + $0x10] sm:$0xff]
        %vm213 = vcmask 326656
        %v214 = vsel %vm213, %v207, -inf
        %215 = vmax.xlane.f32.xlu0 %v214
        %v216 = vpop.xlane.xlu0 %215
        %v217 = vsel %vm213, %v208, -inf
        %218 = vmax.xlane.f32.xlu0 %v217
        %v219 = vpop.xlane.xlu0 %218
        %v220 = vsel %vm213, %v209, -inf
        %221 = vmax.xlane.f32.xlu0 %v220
        %v222 = vpop.xlane.xlu0 %221
        %v223 = vsub.f32 %v207, %v216
        %v224 = vsub.f32 %v208, %v219
        %v225 = vsub.f32 %v209, %v222
        %v226 = vmul.f32 %v223, 1.442695
        %v227 = vpow.pop %v226
        %v228 = vmul.f32 %v224, 1.442695
        %v229 = vpow.pop %v228
        %v230 = vmul.f32 %v225, 1.442695
        %v231 = vpow.pop %v230
        %v232 = vsel %vm213, %v227, 0.0
        %233 = vadd.xlane.f32.xlu0 %v232
        %v234 = vpop.xlane.xlu0 %233
        %v235 = vsel %vm213, %v229, 0.0
        %236 = vadd.xlane.f32.xlu0 %v235
        %v237 = vpop.xlane.xlu0 %236
        %v238 = vsel %vm213, %v231, 0.0
        %239 = vadd.xlane.f32.xlu0 %v238
        %v240 = vpop.xlane.xlu0 %239
        %v241 = vlaneseq
        %v242 = vand.u32 %v241, 127
        %243 = vset.pattern.permute.xlu0 0
        %244 = vperm.xlu0 %243, %v210
        %v245 = vpop.permute.xlu0 %244
        %246 = vset.pattern.permute.xlu0 0
        %247 = vperm.xlu0 %246, %v211
        %v248 = vpop.permute.xlu0 %247
        %249 = vset.pattern.permute.xlu0 0
        %250 = vperm.xlu0 %249, %v212
        %v251 = vpop.permute.xlu0 %250
        %vm252 = vcmp.eq.s32.totalorder %v242, %v245
        %vm253 = vcmp.eq.s32.totalorder %v242, %v248
        %vm254 = vcmp.eq.s32.totalorder %v242, %v251
        %v255 = vsel %vm252, %v223, 0.0
        %v256 = vsel %vm253, %v224, 0.0
        %v257 = vsel %vm254, %v225, 0.0
        %v258 = vsel %vm213, %v255, 0.0
        %259 = vadd.xlane.f32.xlu0 %v258
        %v260 = vpop.xlane.xlu0 %259
        %v261 = vsel %vm213, %v256, 0.0
        %262 = vadd.xlane.f32.xlu0 %v261
        %v263 = vpop.xlane.xlu0 %262
        %v264 = vsel %vm213, %v257, 0.0
        %265 = vadd.xlane.f32.xlu0 %v264
        %v266 = vpop.xlane.xlu0 %265
        %v267 = vlog2.pop %v234
        %v268 = vmul.f32 %v267, 0.6931472
        %v269 = vlog2.pop %v237
        %v270 = vmul.f32 %v269, 0.6931472
        %v271 = vlog2.pop %v240
        %v272 = vmul.f32 %v271, 0.6931472
        %v273 = vsub.f32 %v268, %v260
        %v274 = vsub.f32 %v270, %v263
        %v275 = vsub.f32 %v272, %v266
        %vm276 = vcmask 7168
        %277 = vst.msk [vmem:[%s173] sm:$0xff] %vm276, %v273
        %278 = vst.msk [vmem:[%s173 + $0x8] sm:$0xff] %vm276, %v274
        %279 = vst.msk [vmem:[%s173 + $0x10] sm:$0xff] %vm276, %v275
        %s280 = sand.u32 %s73, 1
        %s281 = sand.u32 %s73, 1
        %s282 = smul.addr %s281, 24
        %s283 = scalar_lea.vmem [#allocation2], %s282
        // Predicated region
        $region29: #{tpu_custom_call.1} parent=27 // pred_check
          %p284 = pneg %p83
        $region30: #{tpu_custom_call.1} parent=27 // pred_check_branch
          %286 = sbr.rel (%p284) target = $region32
        $region31: #{tpu_custom_call.1} parent=27 // pred_region
          %s287 = smul.u32 3, %s13
          %s288 = ssub.s32 4, %s287
          %p289 = scmp.lt.s32.totalorder %s288, 3
          %s290 = scalar_select %p289, %s288, 3
          %s291 = smul.u32 128, %s290
          %p292 = scmp.ne.s32.totalorder 0, %s291
          %s293 = smul.addr %s287, 8
          %s294 = scalar_lea.vmem %s2, %s293
          // Predicated region
          $region33: #{tpu_custom_call.1} parent=31 // pred_check
            %p295 = pneg %p292
          $region34: #{tpu_custom_call.1} parent=31 // pred_check_branch
            %297 = sbr.rel (%p295) target = $region36
          $region35: #{tpu_custom_call.1} parent=31 // pred_region
            // Predicated region
            $region37: #{tpu_custom_call.1} parent=35 // pred_check
              _
            $region38: #{tpu_custom_call.1} parent=35 // pred_check_branch
              %299 = sbr.rel (0) target = $region40
            $region39: #{tpu_custom_call.1} parent=35 // pred_region
              // Predicated region
              $region59: #{tpu_custom_call.1} parent=39 // pred_check
                _
              $region60: #{tpu_custom_call.1} parent=39 // pred_check_branch
                %354 = sbr.rel (0) target = $region62
              $region61: #{tpu_custom_call.1} parent=39 // pred_region
                %s355 = sdiv.u32.pop %s290, 3
                %s356 = srem.u32.pop %s290, 3
                // While loop
                $region63: #{tpu_custom_call.1} parent=61 // loop_pre_header
                  _
                $region64: #{tpu_custom_call.1} parent=61 // loop_header
                  %s358 = sphi 0, %s360
                  %p359 = scmp.ge.s32.totalorder %s358, %s355
                  %s363 = sphi 0, %s374
                  %s364 = sphi %s283, %s377
                  %s365 = sphi %s294, %s378
                $region65: #{tpu_custom_call.1} parent=61 // loop_header_branch
                  %362 = sbr.rel (%p359) target = $region69
                $region66: #{tpu_custom_call.1} parent=61 // loop_body
                  %v366 = vld [vmem:[%s364] sm:$0xff]
                  %367 = vst [vmem:[%s365] sm:$0xff] %v366
                  %v368 = vld [vmem:[%s364 + $0x8] sm:$0xff]
                  %369 = vst [vmem:[%s365 + $0x8] sm:$0xff] %v368
                  %v370 = vld [vmem:[%s364 + $0x10] sm:$0xff]
                  %371 = vst [vmem:[%s365 + $0x10] sm:$0xff] %v370
                  %s372 = sadd.s32 1, %s363
                  %p373 = scmp.ge.s32.totalorder %s372, %s355
                  %s374 = scalar_select %p373, 0, %s372
                  %s375 = smul.u32 %s374, 24
                  %s376 = smul.u32 %s374, 24
                  %s377 = scalar_lea.vmem %s283, %s375 [#allocation2]
                  %s378 = scalar_lea.vmem %s294, %s376
                $region67: #{tpu_custom_call.1} parent=61 // loop_footer
                  %s360 = sadd.s32 %s358, 1
                $region68: #{tpu_custom_call.1} parent=61 // loop_footer_branch
                  %357 = sbr.rel target = $region64
                $region69: #{tpu_custom_call.1} parent=61 // loop_exit
                  _
                %s379 = sdiv.u32.pop %s290, 3
                %s380 = srem.u32.pop %s290, 3
                %s381 = smul.u32 %s379, 3
                %s382 = smul.u32 8, %s381
                %s383 = scalar_lea.vmem %s283, %s382 [#allocation2]
                %s384 = smul.u32 8, %s381
                %s385 = scalar_lea.vmem %s294, %s384
                // While loop
                $region70: #{tpu_custom_call.1} parent=61 // loop_pre_header
                  _
                $region71: #{tpu_custom_call.1} parent=61 // loop_header
                  %s387 = sphi 0, %s389
                  %p388 = scmp.ge.s32.totalorder %s387, %s380
                  %s392 = sphi 0, %s399
                  %s393 = sphi %s383, %s402
                  %s394 = sphi %s385, %s403
                $region72: #{tpu_custom_call.1} parent=61 // loop_header_branch
                  %391 = sbr.rel (%p388) target = $region76
                $region73: #{tpu_custom_call.1} parent=61 // loop_body
                  %v395 = vld [vmem:[%s393] sm:$0xff]
                  %396 = vst [vmem:[%s394] sm:$0xff] %v395
                  %s397 = sadd.s32 1, %s392
                  %p398 = scmp.ge.s32.totalorder %s397, %s380
                  %s399 = scalar_select %p398, 0, %s397
                  %s400 = smul.u32 %s399, 8
                  %s401 = smul.u32 %s399, 8
                  %s402 = scalar_lea.vmem %s383, %s400 [#allocation2]
                  %s403 = scalar_lea.vmem %s385, %s401
                $region74: #{tpu_custom_call.1} parent=61 // loop_footer
                  %s389 = sadd.s32 %s387, 1
                $region75: #{tpu_custom_call.1} parent=61 // loop_footer_branch
                  %386 = sbr.rel target = $region71
                $region76: #{tpu_custom_call.1} parent=61 // loop_exit
                  _
              $region62: #{tpu_custom_call.1} parent=39 // pred_fallthru
                _
              // Predicated region
              $region77: #{tpu_custom_call.1} parent=39 // pred_check
                _
              $region78: #{tpu_custom_call.1} parent=39 // pred_check_branch
                %405 = sbr.rel target = $region80
              $region79: #{tpu_custom_call.1} parent=39 // pred_region
                _
              $region80: #{tpu_custom_call.1} parent=39 // pred_fallthru
                _
            $region40: #{tpu_custom_call.1} parent=35 // pred_fallthru
              _
            // Predicated region
            $region41: #{tpu_custom_call.1} parent=35 // pred_check
              _
            $region42: #{tpu_custom_call.1} parent=35 // pred_check_branch
              %301 = sbr.rel target = $region44
            $region43: #{tpu_custom_call.1} parent=35 // pred_region
              %s303 = ssub.s32 256, 1
              %s304 = sdiv.u32.pop %s290, 3
              %s305 = srem.u32.pop %s290, 3
              // While loop
              $region45: #{tpu_custom_call.1} parent=43 // loop_pre_header
                _
              $region46: #{tpu_custom_call.1} parent=43 // loop_header
                %s307 = sphi 0, %s309
                %p308 = scmp.ge.s32.totalorder %s307, %s304
                %s312 = sphi 0, %s323
                %s313 = sphi %s283, %s326
                %s314 = sphi %s294, %s327
              $region47: #{tpu_custom_call.1} parent=43 // loop_header_branch
                %311 = sbr.rel (%p308) target = $region51
              $region48: #{tpu_custom_call.1} parent=43 // loop_body
                %v315 = vld [vmem:[%s313] sm:%s303]
                %316 = vst [vmem:[%s314] sm:%s303] %v315
                %v317 = vld [vmem:[%s313 + $0x8] sm:%s303]
                %318 = vst [vmem:[%s314 + $0x8] sm:%s303] %v317
                %v319 = vld [vmem:[%s313 + $0x10] sm:%s303]
                %320 = vst [vmem:[%s314 + $0x10] sm:%s303] %v319
                %s321 = sadd.s32 1, %s312
                %p322 = scmp.ge.s32.totalorder %s321, %s304
                %s323 = scalar_select %p322, 0, %s321
                %s324 = smul.u32 %s323, 24
                %s325 = smul.u32 %s323, 24
                %s326 = scalar_lea.vmem %s283, %s324 [#allocation2]
                %s327 = scalar_lea.vmem %s294, %s325
              $region49: #{tpu_custom_call.1} parent=43 // loop_footer
                %s309 = sadd.s32 %s307, 1
              $region50: #{tpu_custom_call.1} parent=43 // loop_footer_branch
                %306 = sbr.rel target = $region46
              $region51: #{tpu_custom_call.1} parent=43 // loop_exit
                _
              %s328 = sdiv.u32.pop %s290, 3
              %s329 = srem.u32.pop %s290, 3
              %s330 = smul.u32 %s328, 3
              %s331 = smul.u32 8, %s330
              %s332 = scalar_lea.vmem %s283, %s331 [#allocation2]
              %s333 = smul.u32 8, %s330
              %s334 = scalar_lea.vmem %s294, %s333
              // While loop
              $region52: #{tpu_custom_call.1} parent=43 // loop_pre_header
                _
              $region53: #{tpu_custom_call.1} parent=43 // loop_header
                %s336 = sphi 0, %s338
                %p337 = scmp.ge.s32.totalorder %s336, %s329
                %s341 = sphi 0, %s348
                %s342 = sphi %s332, %s351
                %s343 = sphi %s334, %s352
              $region54: #{tpu_custom_call.1} parent=43 // loop_header_branch
                %340 = sbr.rel (%p337) target = $region58
              $region55: #{tpu_custom_call.1} parent=43 // loop_body
                %v344 = vld [vmem:[%s342] sm:%s303]
                %345 = vst [vmem:[%s343] sm:%s303] %v344
                %s346 = sadd.s32 1, %s341
                %p347 = scmp.ge.s32.totalorder %s346, %s329
                %s348 = scalar_select %p347, 0, %s346
                %s349 = smul.u32 %s348, 8
                %s350 = smul.u32 %s348, 8
                %s351 = scalar_lea.vmem %s332, %s349 [#allocation2]
                %s352 = scalar_lea.vmem %s334, %s350
              $region56: #{tpu_custom_call.1} parent=43 // loop_footer
                %s338 = sadd.s32 %s336, 1
              $region57: #{tpu_custom_call.1} parent=43 // loop_footer_branch
                %335 = sbr.rel target = $region53
              $region58: #{tpu_custom_call.1} parent=43 // loop_exit
                _
            $region44: #{tpu_custom_call.1} parent=35 // pred_fallthru
              _
          $region36: #{tpu_custom_call.1} parent=31 // pred_fallthru
            _
          %406 = vnop
        $region32: #{tpu_custom_call.1} parent=27 // pred_fallthru
          _
      $region28: #{tpu_custom_call.1} parent=5 // pred_fallthru
        _
      %p407 = scmp.le.s32.totalorder 2, %s8
      // Predicated region
      $region81: #{tpu_custom_call.1} parent=5 // pred_check
        %p408 = pneg %p407
      $region82: #{tpu_custom_call.1} parent=5 // pred_check_branch
        %410 = sbr.rel (%p408) target = $region84
      $region83: #{tpu_custom_call.1} parent=5 // pred_region
        %s411 = ssub.s32 %s8, 2
        // Predicated region
        $region85: #{tpu_custom_call.1} parent=83 // pred_check
          %p412 = pneg %p89
        $region86: #{tpu_custom_call.1} parent=83 // pred_check_branch
          %414 = sbr.rel (%p412) target = $region88
        $region87: #{tpu_custom_call.1} parent=83 // pred_region
          %s415 = sand.u32 %s74, 1
          %s416 = sand.u32 %s74, 1
          %s417 = smul.addr %s416, 24
          %s418 = scalar_lea.vmem [#allocation2], %s417
        $region88: #{tpu_custom_call.1} parent=83 // pred_fallthru
          _
      $region84: #{tpu_custom_call.1} parent=5 // pred_fallthru
        _
    $region6: #{tpu_custom_call.1} parent=1 // loop_footer
      %s12 = sadd.s32 1, %s8
    $region7: #{tpu_custom_call.1} parent=1 // loop_footer_branch
      %7 = sbr.rel target = $region3
    $region8: #{tpu_custom_call.1} parent=1 // loop_exit
      _

</llo_original>
